<compile_context>
chip_gen: v7x
topology: tpu7x:2x2x1
jax: 0.10.0
libtpu: 0.0.40
codegen_flags: <defaults>
</compile_context>

<pallas_src>
import functools

import jax
import jax.numpy as jnp
from jax.experimental import pallas as pl
from jax.experimental.pallas import tpu as pltpu


_PAD = 128     # lane-dense width for hidden activations / square weights
_OUT_W = 8     # narrow output slab width (head1 lanes 0:2, head2 lanes 2:4)


def _round_up(n, m):
    return ((n + m - 1) // m) * m


def _cdiv(a, b):
    return -(-a // b)


def _mlp_kernel(x_ref, w3_ref, wstk_ref, bstk_ref, out_ref):
    """Whole two-headed MLP for one batch tile; weights are VMEM-resident."""
    x = x_ref[...]

    def lin(h, w, b):
        return jnp.dot(h, w, preferred_element_type=jnp.float32) + b

    # Trunk.
    h3 = jnp.tanh(lin(x, w3_ref[...], bstk_ref[0, :]))        # (T, 128)
    h4 = jnp.tanh(lin(h3, wstk_ref[0], bstk_ref[1, :]))       # (T, 128) real 64
    # Fused layer5 | layer7 (one matmul + one tanh):
    #   lanes 0:32   = layer5 output (head-1 branch)
    #   lanes 32:128 = layer7 output (head-2 branch)
    h57 = jnp.tanh(lin(h4, wstk_ref[1], bstk_ref[2, :]))      # (T, 128) fully dense
    # Head-2 tail (layer8 weight rows 0:32 are zero, so only h7 contributes).
    h8 = jnp.tanh(lin(h57, wstk_ref[2], bstk_ref[3, :]))      # (T, 128) real 64
    h9 = jnp.tanh(lin(h8, wstk_ref[3], bstk_ref[4, :]))       # (T, 128) real 32
    # Heads. layer6's padded weight has zero rows 32:128, so only the h5 lanes
    # of h57 contribute. Real output columns are disjoint (0:2 head1, 2:4
    # head2), so summing the two matmuls is exact; only lanes 0:_OUT_W are
    # written back to HBM.
    out128 = (jnp.dot(h57, wstk_ref[4], preferred_element_type=jnp.float32)
              + jnp.dot(h9, wstk_ref[5], preferred_element_type=jnp.float32)
              + bstk_ref[5, :])
    out_ref[...] = out128[:, :_OUT_W]


def init_params(key,
                n_hidden_2=256, n_hidden_3=128, n_hidden_4=64, n_hidden_5=32,
                out_dim1=2, out_dim2=2):
    """PyTorch-style (uniform +-1/sqrt(fan_in)) Linear init.

    Weights are stored transposed: shape (in_features, out_features).
    Biases are stored as (1, out_features).
    """
    dims = [
        ("layer3", n_hidden_2, n_hidden_3),
        ("layer4", n_hidden_3, n_hidden_4),
        ("layer5", n_hidden_4, n_hidden_5),
        ("layer6", n_hidden_5, out_dim1),
        ("layer7", n_hidden_4, n_hidden_5 * 3),
        ("layer8", n_hidden_5 * 3, n_hidden_5 * 2),
        ("layer9", n_hidden_5 * 2, n_hidden_5),
        ("layer10", n_hidden_5, out_dim2),
    ]
    params = {}
    for name, fan_in, fan_out in dims:
        key, kw, kb = jax.random.split(key, 3)
        bound = 1.0 / jnp.sqrt(jnp.float32(fan_in))
        w = jax.random.uniform(kw, (fan_in, fan_out), jnp.float32, -bound, bound)
        b = jax.random.uniform(kb, (1, fan_out), jnp.float32, -bound, bound)
        params[name] = (w, b)
    return params


def prepare_params(params):
    """Pad & pack the weights ONCE into the kernel's resident layout.

    Call this once and reuse the result across forward calls (avoids ~16 small
    padding dispatches per forward).  Returns
    (w3p, w_stack, b_stack, out_dim1, out_dim2).
    """
    w3, b3 = params["layer3"]
    w4, b4 = params["layer4"]
    w5, b5 = params["layer5"]
    w6, b6 = params["layer6"]
    w7, b7 = params["layer7"]
    w8, b8 = params["layer8"]
    w9, b9 = params["layer9"]
    w10, b10 = params["layer10"]

    n_in = w3.shape[0]
    h5_w = w5.shape[1]                       # 32: fused-tile split point
    out_dim1 = w6.shape[1]
    out_dim2 = w10.shape[1]
    assert w3.shape[1] <= _PAD and w4.shape[1] <= _PAD
    assert h5_w + w7.shape[1] <= _PAD        # fused layer5|7 fits 128 lanes
    assert w8.shape[1] <= _PAD and w9.shape[1] <= _PAD
    assert out_dim1 + out_dim2 <= _OUT_W

    def padw(w, r_off=0, c_off=0, rows=_PAD, cols=_PAD):
        out = jnp.zeros((rows, cols), jnp.float32)
        return out.at[r_off:r_off + w.shape[0],
                      c_off:c_off + w.shape[1]].set(w.astype(jnp.float32))

    def padb(*segs):
        row = jnp.zeros((_PAD,), jnp.float32)
        for b, off in segs:
            b = b.reshape(-1).astype(jnp.float32)
            row = row.at[off:off + b.shape[0]].set(b)
        return row

    w3p = padw(w3, rows=n_in, cols=_PAD)                       # (n_in, 128)
    w_stack = jnp.stack([
        padw(w4),                                              # layer4
        padw(w5, c_off=0) + padw(w7, c_off=h5_w),              # fused layer5|7
        padw(w8, r_off=h5_w),                                  # layer8 (reads h7 lanes)
        padw(w9),                                              # layer9
        padw(w6, c_off=0),                                     # layer6  (head 1)
        padw(w10, c_off=out_dim1),                             # layer10 (head 2)
    ])                                                         # (6, 128, 128)
    b_stack = jnp.stack([
        padb((b3, 0)),
        padb((b4, 0)),
        padb((b5, 0), (b7, h5_w)),
        padb((b8, 0)),
        padb((b9, 0)),
        padb((b6, 0), (b10, out_dim1)),
    ])                                                         # (6, 128)
    return w3p, w_stack, b_stack, out_dim1, out_dim2


@functools.partial(jax.jit, static_argnames=("tile_b",))
def _forward_padded(x_padded, w3p, w_stack, b_stack, tile_b):
    B_pad, n_in = x_padded.shape
    grid = (B_pad // tile_b,)

    # Conservative double-buffered VMEM estimate; only override the scoped
    # default when a large tile actually needs it (v5e default is 16 MiB).
    est = 2 * 4 * (tile_b * n_in + tile_b * _OUT_W
                   + w3p.size + w_stack.size + b_stack.size) + (4 << 20)
    cp_kwargs = dict(dimension_semantics=("parallel",))
    if est > (16 << 20):
        cp_kwargs["vmem_limit_bytes"] = int(est)

    return pl.pallas_call(
        _mlp_kernel,
        out_shape=jax.ShapeDtypeStruct((B_pad, _OUT_W), jnp.float32),
        grid=grid,
        in_specs=[
            pl.BlockSpec((tile_b, n_in), lambda i: (i, 0)),      # streamed x
            pl.BlockSpec(w3p.shape, lambda i: (0, 0)),           # resident weights
            pl.BlockSpec(w_stack.shape, lambda i: (0, 0, 0)),    # resident weights
            pl.BlockSpec(b_stack.shape, lambda i: (0, 0)),       # resident biases
        ],
        out_specs=pl.BlockSpec((tile_b, _OUT_W), lambda i: (i, 0)),
        compiler_params=pltpu.CompilerParams(**cp_kwargs),
    )(x_padded, w3p, w_stack, b_stack)


def server_leakyrelunet_4_attack_forward(x, prepared, tile_b=2048, check_nan=False):
    """Two-headed MLP forward as a single batch-tiled Pallas kernel.

    Args:
      x: (B, n_hidden_2) float32.
      prepared: output of prepare_params(params) (padded & packed weights).
      tile_b: max batch rows per grid step.
      check_nan: if True, do a host-side NaN check like the PyTorch module.
    Returns:
      (layer6_out, layer10_out): ((B, out_dim1), (B, out_dim2)) float32.
    """
    w3p, w_stack, b_stack, out_dim1, out_dim2 = prepared

    if check_nan:
        # Mirrors the PyTorch module's host-side np.isnan(np.sum(x)) check.
        # TODO(synk): no in-kernel Pallas equivalent of raising a host-side
        # ValueError; exposed only via this optional (sync-forcing) flag.
        if bool(jnp.isnan(jnp.sum(x))):
            raise ValueError("NaN detected in input")

    B, _ = x.shape
    # Batch tiling: pad only to a multiple of 8, then pick a step count that
    # (a) keeps tiles <= tile_b, (b) gives >= 2 steps for medium/large batches
    # so both v7x TensorCores get work, (c) bounds tail padding to < 8 rows
    # per step (no near-2x waste for batches just over a tile multiple).
    B8 = _round_up(B, 8)
    n_steps = max(1, _cdiv(B8, tile_b))
    if B8 >= 1024:
        n_steps = max(n_steps, 2)
    tile = _round_up(_cdiv(B8, n_steps), 8)
    B_pad = n_steps * tile

    x_padded = jnp.pad(x, ((0, B_pad - B), (0, 0))) if B_pad != B else x
    slab = _forward_padded(x_padded, w3p, w_stack, b_stack, tile)

    out6 = slab[:B, :out_dim1]
    out10 = slab[:B, out_dim1:out_dim1 + out_dim2]
    return out6, out10


if __name__ == "__main__":
    key = jax.random.PRNGKey(0)
    key, k_x, k_p, k_x2 = jax.random.split(key, 4)

    B, n_hidden_2 = 8, 256
    x = jax.random.normal(k_x, (B, n_hidden_2), jnp.float32)
    params = init_params(k_p)
    prepared = prepare_params(params)

    out6, out10 = server_leakyrelunet_4_attack_forward(x, prepared)
    jax.block_until_ready((out6, out10))

    # Pure-JAX reference of the same forward pass.
    def ref_forward(x, params):
        def lin(h, name):
            w, b = params[name]
            return h @ w + b
        h3 = jnp.tanh(lin(x, "layer3"))
        h4 = jnp.tanh(lin(h3, "layer4"))
        h5 = jnp.tanh(lin(h4, "layer5"))
        o6 = lin(h5, "layer6")
        h7 = jnp.tanh(lin(h4, "layer7"))
        h8 = jnp.tanh(lin(h7, "layer8"))
        h9 = jnp.tanh(lin(h8, "layer9"))
        o10 = lin(h9, "layer10")
        return o6, o10

    r6, r10 = ref_forward(x, params)
    assert out6.shape == (B, 2) and out10.shape == (B, 2)
    assert jnp.allclose(out6, r6, atol=1e-5, rtol=1e-5)
    assert jnp.allclose(out10, r10, atol=1e-5, rtol=1e-5)

    # Also exercise the multi-step grid / batch-padding path (small shapes).
    B_big = 100
    x_big = jax.random.normal(k_x2, (B_big, n_hidden_2), jnp.float32)
    ob6, ob10 = server_leakyrelunet_4_attack_forward(x_big, prepared, tile_b=32)
    rb6, rb10 = ref_forward(x_big, params)
    jax.block_until_ready((ob6, ob10))
    assert ob6.shape == (B_big, 2) and ob10.shape == (B_big, 2)
    assert jnp.allclose(ob6, rb6, atol=1e-5, rtol=1e-5)
    assert jnp.allclose(ob10, rb10, atol=1e-5, rtol=1e-5)

    print("KERNEL_OK")
</pallas_src>

<mosaic_0001>
module attributes {stable_mosaic.version = 11 : i64} {
  func.func @_mlp_kernel(%arg0: i32, %arg1: memref<8x256xf32, #tpu.memory_space<vmem>>, %arg2: memref<256x128xf32, #tpu.memory_space<vmem>>, %arg3: memref<6x128x128xf32, #tpu.memory_space<vmem>>, %arg4: memref<6x128xf32, #tpu.memory_space<vmem>>, %arg5: memref<8x8xf32, #tpu.memory_space<vmem>>) attributes {dimension_semantics = [#tpu.dimension_semantics<parallel>], iteration_bounds = array<i64: 1>, scalar_prefetch = 0 : i64, scratch_operands = 0 : i64, tpu.core_type = #tpu.core_type<tc>, window_params = [{transform_indices = @transform_0, window_bounds = array<i64: 8, 256>}, {pipeline_mode = #tpu.pipeline_mode<synchronous>, transform_indices = @transform_1, window_bounds = array<i64: 256, 128>}, {pipeline_mode = #tpu.pipeline_mode<synchronous>, transform_indices = @transform_2, window_bounds = array<i64: 6, 128, 128>}, {pipeline_mode = #tpu.pipeline_mode<synchronous>, transform_indices = @transform_3, window_bounds = array<i64: 6, 128>}, {transform_indices = @transform_4, window_bounds = array<i64: 8, 8>}]} {
    %c0 = arith.constant 0 : index
    %c0_0 = arith.constant 0 : index
    %0 = vector.load %arg1[%c0, %c0_0] : memref<8x256xf32, #tpu.memory_space<vmem>>, vector<8x256xf32>
    %c0_1 = arith.constant 0 : index
    %c0_2 = arith.constant 0 : index
    %1 = vector.load %arg2[%c0_1, %c0_2] : memref<256x128xf32, #tpu.memory_space<vmem>>, vector<256x128xf32>
    %c0_3 = arith.constant 0 : index
    %c0_4 = arith.constant 0 : index
    %2 = vector.load %arg4[%c0_3, %c0_4] : memref<6x128xf32, #tpu.memory_space<vmem>>, vector<1x128xf32>
    %3 = vector.shape_cast %2 : vector<1x128xf32> to vector<128xf32>
    %cst = arith.constant dense<0.000000e+00> : vector<8x128xf32>
    %4 = tpu.matmul %0, %1, %cst {dimension_numbers = #tpu.dot_dimension_numbers<[1], [0], [0], [1], [0, 0, 1, 1], [], []>} : vector<8x256xf32>, vector<256x128xf32>, vector<8x128xf32> -> vector<8x128xf32>
    %5 = vector.shape_cast %3 : vector<128xf32> to vector<1x128xf32>
    %6 = vector.broadcast %5 : vector<1x128xf32> to vector<8x128xf32>
    %7 = arith.addf %4, %6 : vector<8x128xf32>
    %8 = math.tanh %7 : vector<8x128xf32>
    %c0_5 = arith.constant 0 : index
    %c0_6 = arith.constant 0 : index
    %c0_7 = arith.constant 0 : index
    %9 = vector.load %arg3[%c0_5, %c0_6, %c0_7] : memref<6x128x128xf32, #tpu.memory_space<vmem>>, vector<1x128x128xf32>
    %10 = vector.shape_cast %9 : vector<1x128x128xf32> to vector<128x128xf32>
    %c1 = arith.constant 1 : index
    %c0_8 = arith.constant 0 : index
    %11 = vector.load %arg4[%c1, %c0_8] : memref<6x128xf32, #tpu.memory_space<vmem>>, vector<1x128xf32>
    %12 = vector.shape_cast %11 : vector<1x128xf32> to vector<128xf32>
    %cst_9 = arith.constant dense<0.000000e+00> : vector<8x128xf32>
    %13 = tpu.matmul %8, %10, %cst_9 {dimension_numbers = #tpu.dot_dimension_numbers<[1], [0], [0], [1], [0, 0, 1, 1], [], []>} : vector<8x128xf32>, vector<128x128xf32>, vector<8x128xf32> -> vector<8x128xf32>
    %14 = vector.shape_cast %12 : vector<128xf32> to vector<1x128xf32>
    %15 = vector.broadcast %14 : vector<1x128xf32> to vector<8x128xf32>
    %16 = arith.addf %13, %15 : vector<8x128xf32>
    %17 = math.tanh %16 : vector<8x128xf32>
    %c1_10 = arith.constant 1 : index
    %c0_11 = arith.constant 0 : index
    %c0_12 = arith.constant 0 : index
    %18 = vector.load %arg3[%c1_10, %c0_11, %c0_12] : memref<6x128x128xf32, #tpu.memory_space<vmem>>, vector<1x128x128xf32>
    %19 = vector.shape_cast %18 : vector<1x128x128xf32> to vector<128x128xf32>
    %c2 = arith.constant 2 : index
    %c0_13 = arith.constant 0 : index
    %20 = vector.load %arg4[%c2, %c0_13] : memref<6x128xf32, #tpu.memory_space<vmem>>, vector<1x128xf32>
    %21 = vector.shape_cast %20 : vector<1x128xf32> to vector<128xf32>
    %cst_14 = arith.constant dense<0.000000e+00> : vector<8x128xf32>
    %22 = tpu.matmul %17, %19, %cst_14 {dimension_numbers = #tpu.dot_dimension_numbers<[1], [0], [0], [1], [0, 0, 1, 1], [], []>} : vector<8x128xf32>, vector<128x128xf32>, vector<8x128xf32> -> vector<8x128xf32>
    %23 = vector.shape_cast %21 : vector<128xf32> to vector<1x128xf32>
    %24 = vector.broadcast %23 : vector<1x128xf32> to vector<8x128xf32>
    %25 = arith.addf %22, %24 : vector<8x128xf32>
    %26 = math.tanh %25 : vector<8x128xf32>
    %c2_15 = arith.constant 2 : index
    %c0_16 = arith.constant 0 : index
    %c0_17 = arith.constant 0 : index
    %27 = vector.load %arg3[%c2_15, %c0_16, %c0_17] : memref<6x128x128xf32, #tpu.memory_space<vmem>>, vector<1x128x128xf32>
    %28 = vector.shape_cast %27 : vector<1x128x128xf32> to vector<128x128xf32>
    %c3 = arith.constant 3 : index
    %c0_18 = arith.constant 0 : index
    %29 = vector.load %arg4[%c3, %c0_18] : memref<6x128xf32, #tpu.memory_space<vmem>>, vector<1x128xf32>
    %30 = vector.shape_cast %29 : vector<1x128xf32> to vector<128xf32>
    %cst_19 = arith.constant dense<0.000000e+00> : vector<8x128xf32>
    %31 = tpu.matmul %26, %28, %cst_19 {dimension_numbers = #tpu.dot_dimension_numbers<[1], [0], [0], [1], [0, 0, 1, 1], [], []>} : vector<8x128xf32>, vector<128x128xf32>, vector<8x128xf32> -> vector<8x128xf32>
    %32 = vector.shape_cast %30 : vector<128xf32> to vector<1x128xf32>
    %33 = vector.broadcast %32 : vector<1x128xf32> to vector<8x128xf32>
    %34 = arith.addf %31, %33 : vector<8x128xf32>
    %35 = math.tanh %34 : vector<8x128xf32>
    %c3_20 = arith.constant 3 : index
    %c0_21 = arith.constant 0 : index
    %c0_22 = arith.constant 0 : index
    %36 = vector.load %arg3[%c3_20, %c0_21, %c0_22] : memref<6x128x128xf32, #tpu.memory_space<vmem>>, vector<1x128x128xf32>
    %37 = vector.shape_cast %36 : vector<1x128x128xf32> to vector<128x128xf32>
    %c4 = arith.constant 4 : index
    %c0_23 = arith.constant 0 : index
    %38 = vector.load %arg4[%c4, %c0_23] : memref<6x128xf32, #tpu.memory_space<vmem>>, vector<1x128xf32>
    %39 = vector.shape_cast %38 : vector<1x128xf32> to vector<128xf32>
    %cst_24 = arith.constant dense<0.000000e+00> : vector<8x128xf32>
    %40 = tpu.matmul %35, %37, %cst_24 {dimension_numbers = #tpu.dot_dimension_numbers<[1], [0], [0], [1], [0, 0, 1, 1], [], []>} : vector<8x128xf32>, vector<128x128xf32>, vector<8x128xf32> -> vector<8x128xf32>
    %41 = vector.shape_cast %39 : vector<128xf32> to vector<1x128xf32>
    %42 = vector.broadcast %41 : vector<1x128xf32> to vector<8x128xf32>
    %43 = arith.addf %40, %42 : vector<8x128xf32>
    %44 = math.tanh %43 : vector<8x128xf32>
    %c4_25 = arith.constant 4 : index
    %c0_26 = arith.constant 0 : index
    %c0_27 = arith.constant 0 : index
    %45 = vector.load %arg3[%c4_25, %c0_26, %c0_27] : memref<6x128x128xf32, #tpu.memory_space<vmem>>, vector<1x128x128xf32>
    %46 = vector.shape_cast %45 : vector<1x128x128xf32> to vector<128x128xf32>
    %cst_28 = arith.constant dense<0.000000e+00> : vector<8x128xf32>
    %47 = tpu.matmul %26, %46, %cst_28 {dimension_numbers = #tpu.dot_dimension_numbers<[1], [0], [0], [1], [0, 0, 1, 1], [], []>} : vector<8x128xf32>, vector<128x128xf32>, vector<8x128xf32> -> vector<8x128xf32>
    %c5 = arith.constant 5 : index
    %c0_29 = arith.constant 0 : index
    %c0_30 = arith.constant 0 : index
    %48 = vector.load %arg3[%c5, %c0_29, %c0_30] : memref<6x128x128xf32, #tpu.memory_space<vmem>>, vector<1x128x128xf32>
    %49 = vector.shape_cast %48 : vector<1x128x128xf32> to vector<128x128xf32>
    %cst_31 = arith.constant dense<0.000000e+00> : vector<8x128xf32>
    %50 = tpu.matmul %44, %49, %cst_31 {dimension_numbers = #tpu.dot_dimension_numbers<[1], [0], [0], [1], [0, 0, 1, 1], [], []>} : vector<8x128xf32>, vector<128x128xf32>, vector<8x128xf32> -> vector<8x128xf32>
    %51 = arith.addf %47, %50 : vector<8x128xf32>
    %c5_32 = arith.constant 5 : index
    %c0_33 = arith.constant 0 : index
    %52 = vector.load %arg4[%c5_32, %c0_33] : memref<6x128xf32, #tpu.memory_space<vmem>>, vector<1x128xf32>
    %53 = vector.shape_cast %52 : vector<1x128xf32> to vector<128xf32>
    %54 = vector.shape_cast %53 : vector<128xf32> to vector<1x128xf32>
    %55 = vector.broadcast %54 : vector<1x128xf32> to vector<8x128xf32>
    %56 = arith.addf %51, %55 : vector<8x128xf32>
    %57 = vector.extract_strided_slice %56 {offsets = [0, 0], sizes = [8, 8], strides = [1, 1]} : vector<8x128xf32> to vector<8x8xf32>
    %c0_34 = arith.constant 0 : index
    %c0_35 = arith.constant 0 : index
    %58 = vector.load %arg5[%c0_34, %c0_35] : memref<8x8xf32, #tpu.memory_space<vmem>>, vector<8x8xf32>
    tpu.vector_store %arg5[%c0_34, %c0_35], %57 {strides = array<i32>} : memref<8x8xf32, #tpu.memory_space<vmem>>, vector<8x8xf32>,
    return
  }
  func.func @transform_0(%arg0: i32) -> (i32, i32) {
    %c0_i32 = arith.constant 0 : i32
    %c0_i32_0 = arith.constant 0 : i32
    return %arg0, %c0_i32 : i32, i32
  }
  func.func @transform_1(%arg0: i32) -> (i32, i32) {
    %c0_i32 = arith.constant 0 : i32
    %c0_i32_0 = arith.constant 0 : i32
    %c0_i32_1 = arith.constant 0 : i32
    return %c0_i32, %c0_i32_0 : i32, i32
  }
  func.func @transform_2(%arg0: i32) -> (i32, i32, i32) {
    %c0_i32 = arith.constant 0 : i32
    %c0_i32_0 = arith.constant 0 : i32
    %c0_i32_1 = arith.constant 0 : i32
    %c0_i32_2 = arith.constant 0 : i32
    return %c0_i32, %c0_i32_0, %c0_i32_1 : i32, i32, i32
  }
  func.func @transform_3(%arg0: i32) -> (i32, i32) {
    %c0_i32 = arith.constant 0 : i32
    %c0_i32_0 = arith.constant 0 : i32
    %c0_i32_1 = arith.constant 0 : i32
    return %c0_i32, %c0_i32_0 : i32, i32
  }
  func.func @transform_4(%arg0: i32) -> (i32, i32) {
    %c0_i32 = arith.constant 0 : i32
    %c0_i32_0 = arith.constant 0 : i32
    return %arg0, %c0_i32 : i32, i32
  }
}

</mosaic_0001>

<llo_original>
// kernel: _forward_padded.1
$region0: #{_forward_padded.1}
  #allocation0 [shape = 'u32[]', space=smem, size = 0x4, offset = 0x4, fixed_abs, tag = 'smem constant byte address 0x4 - core index']
  #allocation1 [shape = 'u32[144,128]{1,0:T(1,128)}', space=vmem, size = 0x12000, scoped, tag = 'internal scratch']
  %s0 = inlined_call_operand.hbm [shape: f32[8,256], index: 0, kind: input, shape index: {}]
  %s1 = inlined_call_operand.hbm [shape: f32[256,128], index: 1, kind: input, shape index: {}]
  %s2 = inlined_call_operand.hbm [shape: f32[6,128,128], index: 2, kind: input, shape index: {}]
  %s3 = inlined_call_operand.vmem [shape: f32[6,128], index: 3, kind: input, shape index: {}]
  %s4 = inlined_call_operand.hbm [shape: f32[8,8], index: 4, kind: output, shape index: {}]
  %s5 = sld [smem:[#allocation0]]
  $region38: #{_forward_padded.1} parent=0
    _
  %s7 = ssub.s32 1, %s5
  %s8 = scalar_select 0, %s7, %s5
  $region1: #{_forward_padded.1} parent=0
    #allocation2 [shape = 'u8[8192]{0}', space=vmem, size = 0x2000, scoped, tag = 'input window, operand 0, single buffered']
    #allocation3 [shape = 's32[1]{0}', space=sflag, size = 0x4, scoped, tag = 'scoped memory for _forward_padded.1']
    #allocation4 [shape = 's32[1]{0}', space=sflag, size = 0x4, scoped, tag = 'scoped memory for _forward_padded.1']
    #allocation5 [shape = 'u8[131072]{0}', space=vmem, size = 0x20000, scoped, tag = 'input window, operand 1, single buffered']
    #allocation6 [shape = 's32[1]{0}', space=sflag, size = 0x4, scoped, tag = 'scoped memory for _forward_padded.1']
    #allocation7 [shape = 'u8[393216]{0}', space=vmem, size = 0x60000, scoped, tag = 'input window, operand 2, single buffered']
    #allocation8 [shape = 'u8[4096]{0}', space=vmem, size = 0x1000, scoped, tag = 'output window, operand 0, single buffered']
    %9 = vsyncpa [#allocation3], 0
    %10 = vsyncpa [#allocation6], 0
    %11 = vsyncpa [#allocation4], 0
    // Predicated region
    $region2: #{_forward_padded.1} parent=1 // pred_check
      _
    $region3: #{_forward_padded.1} parent=1 // pred_check_branch
      %13 = sbr.rel (0) target = $region5
    $region4: #{_forward_padded.1} parent=1 // pred_region
      %s15 = ssub.s32 256, 256
      %16 = vsyncadd [#allocation3], %s15
      %s18 = sshll.u32 [#allocation2], 4
      %s19 = int_to_ptr.vmem [resolvable:$true] %s18
      %21 = dma.hbm_to_vmem [thread:$0]  %s0, 256, %s19, [#allocation3]
    $region5: #{_forward_padded.1} parent=1 // pred_fallthru
      _
    // Predicated region
    $region6: #{_forward_padded.1} parent=1 // pred_check
      _
    $region7: #{_forward_padded.1} parent=1 // pred_check_branch
      %23 = sbr.rel (0) target = $region9
    $region8: #{_forward_padded.1} parent=1 // pred_region
      %s25 = ssub.s32 4096, 4096
      %26 = vsyncadd [#allocation6], %s25
      %s27 = sshll.u32 [#allocation5], 4
      %s28 = int_to_ptr.vmem [resolvable:$true] %s27
      %33 = dma.hbm_to_vmem [thread:$0]  %s1, 4096, %s28, [#allocation6], 128, 128, 8
    $region9: #{_forward_padded.1} parent=1 // pred_fallthru
      _
    // Predicated region
    $region10: #{_forward_padded.1} parent=1 // pred_check
      _
    $region11: #{_forward_padded.1} parent=1 // pred_check_branch
      %35 = sbr.rel (0) target = $region13
    $region12: #{_forward_padded.1} parent=1 // pred_region
      %s37 = ssub.s32 12288, 12288
      %38 = vsyncadd [#allocation6], %s37
      %s39 = sshll.u32 [#allocation7], 4
      %s40 = int_to_ptr.vmem [resolvable:$true] %s39
      %45 = dma.hbm_to_vmem [thread:$0]  %s2, 12288, %s40, [#allocation6], 128, 128, 8
    $region13: #{_forward_padded.1} parent=1 // pred_fallthru
      _
    // Predicated region
    $region14: #{_forward_padded.1} parent=1 // pred_check
      _
    $region15: #{_forward_padded.1} parent=1 // pred_check_branch
      %47 = sbr.rel (0) target = $region17
    $region16: #{_forward_padded.1} parent=1 // pred_region
      _
    $region17: #{_forward_padded.1} parent=1 // pred_fallthru
      _
    // Predicated region
    $region18: #{_forward_padded.1} parent=1 // pred_check
      _
    $region19: #{_forward_padded.1} parent=1 // pred_check_branch
      %49 = sbr.rel (0) target = $region21
    $region20: #{_forward_padded.1} parent=1 // pred_region
      %50 = dma.done [#allocation3], 256
    $region21: #{_forward_padded.1} parent=1 // pred_fallthru
      _
    // Predicated region
    $region22: #{_forward_padded.1} parent=1 // pred_check
      _
    $region23: #{_forward_padded.1} parent=1 // pred_check_branch
      %52 = sbr.rel (0) target = $region25
    $region24: #{_forward_padded.1} parent=1 // pred_region
      %53 = dma.done [#allocation6], 4096
    $region25: #{_forward_padded.1} parent=1 // pred_fallthru
      _
    // Predicated region
    $region26: #{_forward_padded.1} parent=1 // pred_check
      _
    $region27: #{_forward_padded.1} parent=1 // pred_check_branch
      %55 = sbr.rel (0) target = $region29
    $region28: #{_forward_padded.1} parent=1 // pred_region
      %56 = dma.done [#allocation6], 12288
    $region29: #{_forward_padded.1} parent=1 // pred_fallthru
      _
    %v57 = vld [vmem:[#allocation2] sm:$0xff]
    %v58 = vld [vmem:[#allocation2 + $0x8] sm:$0xff]
    %v59 = vld [vmem:[#allocation5] sm:$0xff]
    %v60 = vld [vmem:[#allocation5 + $0x8] sm:$0xff]
    %v61 = vld [vmem:[#allocation5 + $0x10] sm:$0xff]
    %v62 = vld [vmem:[#allocation5 + $0x18] sm:$0xff]
    %v63 = vld [vmem:[#allocation5 + $0x20] sm:$0xff]
    %v64 = vld [vmem:[#allocation5 + $0x28] sm:$0xff]
    %v65 = vld [vmem:[#allocation5 + $0x30] sm:$0xff]
    %v66 = vld [vmem:[#allocation5 + $0x38] sm:$0xff]
    %v67 = vld [vmem:[#allocation5 + $0x40] sm:$0xff]
    %v68 = vld [vmem:[#allocation5 + $0x48] sm:$0xff]
    %v69 = vld [vmem:[#allocation5 + $0x50] sm:$0xff]
    %v70 = vld [vmem:[#allocation5 + $0x58] sm:$0xff]
    %v71 = vld [vmem:[#allocation5 + $0x60] sm:$0xff]
    %v72 = vld [vmem:[#allocation5 + $0x68] sm:$0xff]
    %v73 = vld [vmem:[#allocation5 + $0x70] sm:$0xff]
    %v74 = vld [vmem:[#allocation5 + $0x78] sm:$0xff]
    %v75 = vld [vmem:[#allocation5 + $0x80] sm:$0xff]
    %v76 = vld [vmem:[#allocation5 + $0x88] sm:$0xff]
    %v77 = vld [vmem:[#allocation5 + $0x90] sm:$0xff]
    %v78 = vld [vmem:[#allocation5 + $0x98] sm:$0xff]
    %v79 = vld [vmem:[#allocation5 + $0xa0] sm:$0xff]
    %v80 = vld [vmem:[#allocation5 + $0xa8] sm:$0xff]
    %v81 = vld [vmem:[#allocation5 + $0xb0] sm:$0xff]
    %v82 = vld [vmem:[#allocation5 + $0xb8] sm:$0xff]
    %v83 = vld [vmem:[#allocation5 + $0xc0] sm:$0xff]
    %v84 = vld [vmem:[#allocation5 + $0xc8] sm:$0xff]
    %v85 = vld [vmem:[#allocation5 + $0xd0] sm:$0xff]
    %v86 = vld [vmem:[#allocation5 + $0xd8] sm:$0xff]
    %v87 = vld [vmem:[#allocation5 + $0xe0] sm:$0xff]
    %v88 = vld [vmem:[#allocation5 + $0xe8] sm:$0xff]
    %v89 = vld [vmem:[#allocation5 + $0xf0] sm:$0xff]
    %v90 = vld [vmem:[#allocation5 + $0xf8] sm:$0xff]
    %v91 = vld [vmem:[%s3] sm:$0x1]
    %v92 = vlaneseq
    %v93 = vshrl.u32 %v92, 7
    %v94 = vsub.s32 0, %v93
    %v95 = vrot.slane %v91, %v94
    %96 = vmatprep.subr.mxu0 0.0
    %97 = vmatpush1.msra.mxu0 %v59
    %98 = vmatprep.subr.mxu0 0.0
    %99 = vmatpush1.msra.mxu0 %v60
    %100 = vmatprep.subr.mxu0 0.0
    %101 = vmatpush1.msra.mxu0 %v61
    %102 = vmatprep.subr.mxu0 0.0
    %103 = vmatpush1.msra.mxu0 %v62
    %104 = vmatprep.subr.mxu0 0.0
    %105 = vmatpush1.msra.mxu0 %v63
    %106 = vmatprep.subr.mxu0 0.0
    %107 = vmatpush1.msra.mxu0 %v64
    %108 = vmatprep.subr.mxu0 0.0
    %109 = vmatpush1.msra.mxu0 %v65
    %110 = vmatprep.subr.mxu0 0.0
    %111 = vmatpush1.msra.mxu0 %v66
    %112 = vmatprep.subr.mxu0 0.0
    %113 = vmatpush1.msra.mxu0 %v67
    %114 = vmatprep.subr.mxu0 0.0
    %115 = vmatpush1.msra.mxu0 %v68
    %116 = vmatprep.subr.mxu0 0.0
    %117 = vmatpush1.msra.mxu0 %v69
    %118 = vmatprep.subr.mxu0 0.0
    %119 = vmatpush1.msra.mxu0 %v70
    %120 = vmatprep.subr.mxu0 0.0
    %121 = vmatpush1.msra.mxu0 %v71
    %122 = vmatprep.subr.mxu0 0.0
    %123 = vmatpush1.msra.mxu0 %v72
    %124 = vmatprep.subr.mxu0 0.0
    %125 = vmatpush1.msra.mxu0 %v73
    %126 = vmatprep.subr.mxu0 0.0
    %127 = vmatpush1.msra.mxu0 %v74
    %128 = vmatprep.subr.mxu0 0.0
    %129 = vmatpush1.msra.mxu0 %v75
    %130 = vmatprep.subr.mxu0 0.0
    %131 = vmatpush1.msra.mxu0 %v76
    %132 = vmatprep.subr.mxu0 0.0
    %133 = vmatpush1.msra.mxu0 %v77
    %134 = vmatprep.subr.mxu0 0.0
    %135 = vmatpush1.msra.mxu0 %v78
    %136 = vmatprep.subr.mxu0 0.0
    %137 = vmatpush1.msra.mxu0 %v79
    %138 = vmatprep.subr.mxu0 0.0
    %139 = vmatpush1.msra.mxu0 %v80
    %140 = vmatprep.subr.mxu0 0.0
    %141 = vmatpush1.msra.mxu0 %v81
    %142 = vmatprep.subr.mxu0 0.0
    %143 = vmatpush1.msra.mxu0 %v82
    %144 = vmatprep.subr.mxu0 0.0
    %145 = vmatpush1.msra.mxu0 %v83
    %146 = vmatprep.subr.mxu0 0.0
    %147 = vmatpush1.msra.mxu0 %v84
    %148 = vmatprep.subr.mxu0 0.0
    %149 = vmatpush1.msra.mxu0 %v85
    %150 = vmatprep.subr.mxu0 0.0
    %151 = vmatpush1.msra.mxu0 %v86
    %152 = vmatprep.subr.mxu0 0.0
    %153 = vmatpush1.msra.mxu0 %v87
    %154 = vmatprep.subr.mxu0 0.0
    %155 = vmatpush1.msra.mxu0 %v88
    %156 = vmatprep.subr.mxu0 0.0
    %157 = vmatpush1.msra.mxu0 %v89
    %158 = vmatprep.subr.mxu0 0.0
    %159 = vmatpush1.msra.mxu0 %v90
    %160 = vmatprep.mubr.f32.mxu0 %v58
    %161 = vmatmul.mubr.f32.gmra.mrb[0].mxu0 %v57
    %v162 = vpop.f32.mrb[0].mxu0
    %v163 = vadd.f32 %v95, %v162
    %v164 = vpop.f32.mrb[0].mxu0
    %165 = vdwg.mxu0
    %v166 = vtanh.pop %v163
    %v167 = vld [vmem:[#allocation7] sm:$0xff]
    %v168 = vld [vmem:[#allocation7 + $0x8] sm:$0xff]
    %v169 = vld [vmem:[#allocation7 + $0x10] sm:$0xff]
    %v170 = vld [vmem:[#allocation7 + $0x18] sm:$0xff]
    %v171 = vld [vmem:[#allocation7 + $0x20] sm:$0xff]
    %v172 = vld [vmem:[#allocation7 + $0x28] sm:$0xff]
    %v173 = vld [vmem:[#allocation7 + $0x30] sm:$0xff]
    %v174 = vld [vmem:[#allocation7 + $0x38] sm:$0xff]
    %v175 = vld [vmem:[#allocation7 + $0x40] sm:$0xff]
    %v176 = vld [vmem:[#allocation7 + $0x48] sm:$0xff]
    %v177 = vld [vmem:[#allocation7 + $0x50] sm:$0xff]
    %v178 = vld [vmem:[#allocation7 + $0x58] sm:$0xff]
    %v179 = vld [vmem:[#allocation7 + $0x60] sm:$0xff]
    %v180 = vld [vmem:[#allocation7 + $0x68] sm:$0xff]
    %v181 = vld [vmem:[#allocation7 + $0x70] sm:$0xff]
    %v182 = vld [vmem:[#allocation7 + $0x78] sm:$0xff]
    %v183 = vld [vmem:[%s3 + $0x1] sm:$0x1]
    %v184 = vlaneseq
    %v185 = vshrl.u32 %v184, 7
    %v186 = vsub.s32 0, %v185
    %v187 = vrot.slane %v183, %v186
    %188 = vmatprep.subr.mxu0 0.0
    %189 = vmatpush1.msra.mxu0 %v167
    %190 = vmatprep.subr.mxu0 0.0
    %191 = vmatpush1.msra.mxu0 %v168
    %192 = vmatprep.subr.mxu0 0.0
    %193 = vmatpush1.msra.mxu0 %v169
    %194 = vmatprep.subr.mxu0 0.0
    %195 = vmatpush1.msra.mxu0 %v170
    %196 = vmatprep.subr.mxu0 0.0
    %197 = vmatpush1.msra.mxu0 %v171
    %198 = vmatprep.subr.mxu0 0.0
    %199 = vmatpush1.msra.mxu0 %v172
    %200 = vmatprep.subr.mxu0 0.0
    %201 = vmatpush1.msra.mxu0 %v173
    %202 = vmatprep.subr.mxu0 0.0
    %203 = vmatpush1.msra.mxu0 %v174
    %204 = vmatprep.subr.mxu0 0.0
    %205 = vmatpush1.msra.mxu0 %v175
    %206 = vmatprep.subr.mxu0 0.0
    %207 = vmatpush1.msra.mxu0 %v176
    %208 = vmatprep.subr.mxu0 0.0
    %209 = vmatpush1.msra.mxu0 %v177
    %210 = vmatprep.subr.mxu0 0.0
    %211 = vmatpush1.msra.mxu0 %v178
    %212 = vmatprep.subr.mxu0 0.0
    %213 = vmatpush1.msra.mxu0 %v179
    %214 = vmatprep.subr.mxu0 0.0
    %215 = vmatpush1.msra.mxu0 %v180
    %216 = vmatprep.subr.mxu0 0.0
    %217 = vmatpush1.msra.mxu0 %v181
    %218 = vmatprep.subr.mxu0 0.0
    %219 = vmatpush1.msra.mxu0 %v182
    %220 = vmatprep.subr.mxu0 0.0
    %221 = vmatpush1.msra.mxu0 0.0
    %222 = vmatprep.subr.mxu0 0.0
    %223 = vmatpush1.msra.mxu0 0.0
    %224 = vmatprep.subr.mxu0 0.0
    %225 = vmatpush1.msra.mxu0 0.0
    %226 = vmatprep.subr.mxu0 0.0
    %227 = vmatpush1.msra.mxu0 0.0
    %228 = vmatprep.subr.mxu0 0.0
    %229 = vmatpush1.msra.mxu0 0.0
    %230 = vmatprep.subr.mxu0 0.0
    %231 = vmatpush1.msra.mxu0 0.0
    %232 = vmatprep.subr.mxu0 0.0
    %233 = vmatpush1.msra.mxu0 0.0
    %234 = vmatprep.subr.mxu0 0.0
    %235 = vmatpush1.msra.mxu0 0.0
    %236 = vmatprep.subr.mxu0 0.0
    %237 = vmatpush1.msra.mxu0 0.0
    %238 = vmatprep.subr.mxu0 0.0
    %239 = vmatpush1.msra.mxu0 0.0
    %240 = vmatprep.subr.mxu0 0.0
    %241 = vmatpush1.msra.mxu0 0.0
    %242 = vmatprep.subr.mxu0 0.0
    %243 = vmatpush1.msra.mxu0 0.0
    %244 = vmatprep.subr.mxu0 0.0
    %245 = vmatpush1.msra.mxu0 0.0
    %246 = vmatprep.subr.mxu0 0.0
    %247 = vmatpush1.msra.mxu0 0.0
    %248 = vmatprep.subr.mxu0 0.0
    %249 = vmatpush1.msra.mxu0 0.0
    %250 = vmatprep.subr.mxu0 0.0
    %251 = vmatpush1.msra.mxu0 0.0
    %252 = vmatprep.mubr.f32.mxu0 0.0
    %253 = vmatmul.mubr.f32.gmra.mrb[0].mxu0 %v166
    %v254 = vpop.f32.mrb[0].mxu0
    %v255 = vadd.f32 %v187, %v254
    %v256 = vpop.f32.mrb[0].mxu0
    %257 = vdwg.mxu0
    %v258 = vtanh.pop %v255
    %s259 = scalar_lea.vmem [#allocation7], 128
    %v260 = vld [vmem:[%s259] sm:$0xff]
    %v261 = vld [vmem:[%s259 + $0x8] sm:$0xff]
    %v262 = vld [vmem:[%s259 + $0x10] sm:$0xff]
    %v263 = vld [vmem:[%s259 + $0x18] sm:$0xff]
    %v264 = vld [vmem:[%s259 + $0x20] sm:$0xff]
    %v265 = vld [vmem:[%s259 + $0x28] sm:$0xff]
    %v266 = vld [vmem:[%s259 + $0x30] sm:$0xff]
    %v267 = vld [vmem:[%s259 + $0x38] sm:$0xff]
    %v268 = vld [vmem:[%s259 + $0x40] sm:$0xff]
    %v269 = vld [vmem:[%s259 + $0x48] sm:$0xff]
    %v270 = vld [vmem:[%s259 + $0x50] sm:$0xff]
    %v271 = vld [vmem:[%s259 + $0x58] sm:$0xff]
    %v272 = vld [vmem:[%s259 + $0x60] sm:$0xff]
    %v273 = vld [vmem:[%s259 + $0x68] sm:$0xff]
    %v274 = vld [vmem:[%s259 + $0x70] sm:$0xff]
    %v275 = vld [vmem:[%s259 + $0x78] sm:$0xff]
    %v276 = vld [vmem:[%s3 + $0x2] sm:$0x1]
    %v277 = vlaneseq
    %v278 = vshrl.u32 %v277, 7
    %v279 = vsub.s32 0, %v278
    %v280 = vrot.slane %v276, %v279
    %281 = vmatprep.subr.mxu0 0.0
    %282 = vmatpush1.msra.mxu0 %v260
    %283 = vmatprep.subr.mxu0 0.0
    %284 = vmatpush1.msra.mxu0 %v261
    %285 = vmatprep.subr.mxu0 0.0
    %286 = vmatpush1.msra.mxu0 %v262
    %287 = vmatprep.subr.mxu0 0.0
    %288 = vmatpush1.msra.mxu0 %v263
    %289 = vmatprep.subr.mxu0 0.0
    %290 = vmatpush1.msra.mxu0 %v264
    %291 = vmatprep.subr.mxu0 0.0
    %292 = vmatpush1.msra.mxu0 %v265
    %293 = vmatprep.subr.mxu0 0.0
    %294 = vmatpush1.msra.mxu0 %v266
    %295 = vmatprep.subr.mxu0 0.0
    %296 = vmatpush1.msra.mxu0 %v267
    %297 = vmatprep.subr.mxu0 0.0
    %298 = vmatpush1.msra.mxu0 %v268
    %299 = vmatprep.subr.mxu0 0.0
    %300 = vmatpush1.msra.mxu0 %v269
    %301 = vmatprep.subr.mxu0 0.0
    %302 = vmatpush1.msra.mxu0 %v270
    %303 = vmatprep.subr.mxu0 0.0
    %304 = vmatpush1.msra.mxu0 %v271
    %305 = vmatprep.subr.mxu0 0.0
    %306 = vmatpush1.msra.mxu0 %v272
    %307 = vmatprep.subr.mxu0 0.0
    %308 = vmatpush1.msra.mxu0 %v273
    %309 = vmatprep.subr.mxu0 0.0
    %310 = vmatpush1.msra.mxu0 %v274
    %311 = vmatprep.subr.mxu0 0.0
    %312 = vmatpush1.msra.mxu0 %v275
    %313 = vmatprep.subr.mxu0 0.0
    %314 = vmatpush1.msra.mxu0 0.0
    %315 = vmatprep.subr.mxu0 0.0
    %316 = vmatpush1.msra.mxu0 0.0
    %317 = vmatprep.subr.mxu0 0.0
    %318 = vmatpush1.msra.mxu0 0.0
    %319 = vmatprep.subr.mxu0 0.0
    %320 = vmatpush1.msra.mxu0 0.0
    %321 = vmatprep.subr.mxu0 0.0
    %322 = vmatpush1.msra.mxu0 0.0
    %323 = vmatprep.subr.mxu0 0.0
    %324 = vmatpush1.msra.mxu0 0.0
    %325 = vmatprep.subr.mxu0 0.0
    %326 = vmatpush1.msra.mxu0 0.0
    %327 = vmatprep.subr.mxu0 0.0
    %328 = vmatpush1.msra.mxu0 0.0
    %329 = vmatprep.subr.mxu0 0.0
    %330 = vmatpush1.msra.mxu0 0.0
    %331 = vmatprep.subr.mxu0 0.0
    %332 = vmatpush1.msra.mxu0 0.0
    %333 = vmatprep.subr.mxu0 0.0
    %334 = vmatpush1.msra.mxu0 0.0
    %335 = vmatprep.subr.mxu0 0.0
    %336 = vmatpush1.msra.mxu0 0.0
    %337 = vmatprep.subr.mxu0 0.0
    %338 = vmatpush1.msra.mxu0 0.0
    %339 = vmatprep.subr.mxu0 0.0
    %340 = vmatpush1.msra.mxu0 0.0
    %341 = vmatprep.subr.mxu0 0.0
    %342 = vmatpush1.msra.mxu0 0.0
    %343 = vmatprep.subr.mxu0 0.0
    %344 = vmatpush1.msra.mxu0 0.0
    %345 = vmatprep.mubr.f32.mxu0 0.0
    %346 = vmatmul.mubr.f32.gmra.mrb[0].mxu0 %v258
    %v347 = vpop.f32.mrb[0].mxu0
    %v348 = vadd.f32 %v280, %v347
    %v349 = vpop.f32.mrb[0].mxu0
    %350 = vdwg.mxu0
    %v351 = vtanh.pop %v348
    %s352 = scalar_lea.vmem [#allocation7], 256
    %v353 = vld [vmem:[%s352] sm:$0xff]
    %v354 = vld [vmem:[%s352 + $0x8] sm:$0xff]
    %v355 = vld [vmem:[%s352 + $0x10] sm:$0xff]
    %v356 = vld [vmem:[%s352 + $0x18] sm:$0xff]
    %v357 = vld [vmem:[%s352 + $0x20] sm:$0xff]
    %v358 = vld [vmem:[%s352 + $0x28] sm:$0xff]
    %v359 = vld [vmem:[%s352 + $0x30] sm:$0xff]
    %v360 = vld [vmem:[%s352 + $0x38] sm:$0xff]
    %v361 = vld [vmem:[%s352 + $0x40] sm:$0xff]
    %v362 = vld [vmem:[%s352 + $0x48] sm:$0xff]
    %v363 = vld [vmem:[%s352 + $0x50] sm:$0xff]
    %v364 = vld [vmem:[%s352 + $0x58] sm:$0xff]
    %v365 = vld [vmem:[%s352 + $0x60] sm:$0xff]
    %v366 = vld [vmem:[%s352 + $0x68] sm:$0xff]
    %v367 = vld [vmem:[%s352 + $0x70] sm:$0xff]
    %v368 = vld [vmem:[%s352 + $0x78] sm:$0xff]
    %v369 = vld [vmem:[%s3 + $0x3] sm:$0x1]
    %v370 = vlaneseq
    %v371 = vshrl.u32 %v370, 7
    %v372 = vsub.s32 0, %v371
    %v373 = vrot.slane %v369, %v372
    %374 = vmatprep.subr.mxu0 0.0
    %375 = vmatpush1.msra.mxu0 %v353
    %376 = vmatprep.subr.mxu0 0.0
    %377 = vmatpush1.msra.mxu0 %v354
    %378 = vmatprep.subr.mxu0 0.0
    %379 = vmatpush1.msra.mxu0 %v355
    %380 = vmatprep.subr.mxu0 0.0
    %381 = vmatpush1.msra.mxu0 %v356
    %382 = vmatprep.subr.mxu0 0.0
    %383 = vmatpush1.msra.mxu0 %v357
    %384 = vmatprep.subr.mxu0 0.0
    %385 = vmatpush1.msra.mxu0 %v358
    %386 = vmatprep.subr.mxu0 0.0
    %387 = vmatpush1.msra.mxu0 %v359
    %388 = vmatprep.subr.mxu0 0.0
    %389 = vmatpush1.msra.mxu0 %v360
    %390 = vmatprep.subr.mxu0 0.0
    %391 = vmatpush1.msra.mxu0 %v361
    %392 = vmatprep.subr.mxu0 0.0
    %393 = vmatpush1.msra.mxu0 %v362
    %394 = vmatprep.subr.mxu0 0.0
    %395 = vmatpush1.msra.mxu0 %v363
    %396 = vmatprep.subr.mxu0 0.0
    %397 = vmatpush1.msra.mxu0 %v364
    %398 = vmatprep.subr.mxu0 0.0
    %399 = vmatpush1.msra.mxu0 %v365
    %400 = vmatprep.subr.mxu0 0.0
    %401 = vmatpush1.msra.mxu0 %v366
    %402 = vmatprep.subr.mxu0 0.0
    %403 = vmatpush1.msra.mxu0 %v367
    %404 = vmatprep.subr.mxu0 0.0
    %405 = vmatpush1.msra.mxu0 %v368
    %406 = vmatprep.subr.mxu0 0.0
    %407 = vmatpush1.msra.mxu0 0.0
    %408 = vmatprep.subr.mxu0 0.0
    %409 = vmatpush1.msra.mxu0 0.0
    %410 = vmatprep.subr.mxu0 0.0
    %411 = vmatpush1.msra.mxu0 0.0
    %412 = vmatprep.subr.mxu0 0.0
    %413 = vmatpush1.msra.mxu0 0.0
    %414 = vmatprep.subr.mxu0 0.0
    %415 = vmatpush1.msra.mxu0 0.0
    %416 = vmatprep.subr.mxu0 0.0
    %417 = vmatpush1.msra.mxu0 0.0
    %418 = vmatprep.subr.mxu0 0.0
    %419 = vmatpush1.msra.mxu0 0.0
    %420 = vmatprep.subr.mxu0 0.0
    %421 = vmatpush1.msra.mxu0 0.0
    %422 = vmatprep.subr.mxu0 0.0
    %423 = vmatpush1.msra.mxu0 0.0
    %424 = vmatprep.subr.mxu0 0.0
    %425 = vmatpush1.msra.mxu0 0.0
    %426 = vmatprep.subr.mxu0 0.0
    %427 = vmatpush1.msra.mxu0 0.0
    %428 = vmatprep.subr.mxu0 0.0
    %429 = vmatpush1.msra.mxu0 0.0
    %430 = vmatprep.subr.mxu0 0.0
    %431 = vmatpush1.msra.mxu0 0.0
    %432 = vmatprep.subr.mxu0 0.0
    %433 = vmatpush1.msra.mxu0 0.0
    %434 = vmatprep.subr.mxu0 0.0
    %435 = vmatpush1.msra.mxu0 0.0
    %436 = vmatprep.subr.mxu0 0.0
    %437 = vmatpush1.msra.mxu0 0.0
    %438 = vmatprep.mubr.f32.mxu0 0.0
    %439 = vmatmul.mubr.f32.gmra.mrb[0].mxu0 %v351
    %v440 = vpop.f32.mrb[0].mxu0
    %v441 = vadd.f32 %v373, %v440
    %v442 = vpop.f32.mrb[0].mxu0
    %443 = vdwg.mxu0
    %v444 = vtanh.pop %v441
    %s445 = scalar_lea.vmem [#allocation7], 384
    %v446 = vld [vmem:[%s445] sm:$0xff]
    %v447 = vld [vmem:[%s445 + $0x8] sm:$0xff]
    %v448 = vld [vmem:[%s445 + $0x10] sm:$0xff]
    %v449 = vld [vmem:[%s445 + $0x18] sm:$0xff]
    %v450 = vld [vmem:[%s445 + $0x20] sm:$0xff]
    %v451 = vld [vmem:[%s445 + $0x28] sm:$0xff]
    %v452 = vld [vmem:[%s445 + $0x30] sm:$0xff]
    %v453 = vld [vmem:[%s445 + $0x38] sm:$0xff]
    %v454 = vld [vmem:[%s445 + $0x40] sm:$0xff]
    %v455 = vld [vmem:[%s445 + $0x48] sm:$0xff]
    %v456 = vld [vmem:[%s445 + $0x50] sm:$0xff]
    %v457 = vld [vmem:[%s445 + $0x58] sm:$0xff]
    %v458 = vld [vmem:[%s445 + $0x60] sm:$0xff]
    %v459 = vld [vmem:[%s445 + $0x68] sm:$0xff]
    %v460 = vld [vmem:[%s445 + $0x70] sm:$0xff]
    %v461 = vld [vmem:[%s445 + $0x78] sm:$0xff]
    %v462 = vld [vmem:[%s3 + $0x4] sm:$0x1]
    %v463 = vlaneseq
    %v464 = vshrl.u32 %v463, 7
    %v465 = vsub.s32 0, %v464
    %v466 = vrot.slane %v462, %v465
    %467 = vmatprep.subr.mxu0 0.0
    %468 = vmatpush1.msra.mxu0 %v446
    %469 = vmatprep.subr.mxu0 0.0
    %470 = vmatpush1.msra.mxu0 %v447
    %471 = vmatprep.subr.mxu0 0.0
    %472 = vmatpush1.msra.mxu0 %v448
    %473 = vmatprep.subr.mxu0 0.0
    %474 = vmatpush1.msra.mxu0 %v449
    %475 = vmatprep.subr.mxu0 0.0
    %476 = vmatpush1.msra.mxu0 %v450
    %477 = vmatprep.subr.mxu0 0.0
    %478 = vmatpush1.msra.mxu0 %v451
    %479 = vmatprep.subr.mxu0 0.0
    %480 = vmatpush1.msra.mxu0 %v452
    %481 = vmatprep.subr.mxu0 0.0
    %482 = vmatpush1.msra.mxu0 %v453
    %483 = vmatprep.subr.mxu0 0.0
    %484 = vmatpush1.msra.mxu0 %v454
    %485 = vmatprep.subr.mxu0 0.0
    %486 = vmatpush1.msra.mxu0 %v455
    %487 = vmatprep.subr.mxu0 0.0
    %488 = vmatpush1.msra.mxu0 %v456
    %489 = vmatprep.subr.mxu0 0.0
    %490 = vmatpush1.msra.mxu0 %v457
    %491 = vmatprep.subr.mxu0 0.0
    %492 = vmatpush1.msra.mxu0 %v458
    %493 = vmatprep.subr.mxu0 0.0
    %494 = vmatpush1.msra.mxu0 %v459
    %495 = vmatprep.subr.mxu0 0.0
    %496 = vmatpush1.msra.mxu0 %v460
    %497 = vmatprep.subr.mxu0 0.0
    %498 = vmatpush1.msra.mxu0 %v461
    %499 = vmatprep.subr.mxu0 0.0
    %500 = vmatpush1.msra.mxu0 0.0
    %501 = vmatprep.subr.mxu0 0.0
    %502 = vmatpush1.msra.mxu0 0.0
    %503 = vmatprep.subr.mxu0 0.0
    %504 = vmatpush1.msra.mxu0 0.0
    %505 = vmatprep.subr.mxu0 0.0
    %506 = vmatpush1.msra.mxu0 0.0
    %507 = vmatprep.subr.mxu0 0.0
    %508 = vmatpush1.msra.mxu0 0.0
    %509 = vmatprep.subr.mxu0 0.0
    %510 = vmatpush1.msra.mxu0 0.0
    %511 = vmatprep.subr.mxu0 0.0
    %512 = vmatpush1.msra.mxu0 0.0
    %513 = vmatprep.subr.mxu0 0.0
    %514 = vmatpush1.msra.mxu0 0.0
    %515 = vmatprep.subr.mxu0 0.0
    %516 = vmatpush1.msra.mxu0 0.0
    %517 = vmatprep.subr.mxu0 0.0
    %518 = vmatpush1.msra.mxu0 0.0
    %519 = vmatprep.subr.mxu0 0.0
    %520 = vmatpush1.msra.mxu0 0.0
    %521 = vmatprep.subr.mxu0 0.0
    %522 = vmatpush1.msra.mxu0 0.0
    %523 = vmatprep.subr.mxu0 0.0
    %524 = vmatpush1.msra.mxu0 0.0
    %525 = vmatprep.subr.mxu0 0.0
    %526 = vmatpush1.msra.mxu0 0.0
    %527 = vmatprep.subr.mxu0 0.0
    %528 = vmatpush1.msra.mxu0 0.0
    %529 = vmatprep.subr.mxu0 0.0
    %530 = vmatpush1.msra.mxu0 0.0
    %531 = vmatprep.mubr.f32.mxu0 0.0
    %532 = vmatmul.mubr.f32.gmra.mrb[0].mxu0 %v444
    %v533 = vpop.f32.mrb[0].mxu0
    %v534 = vadd.f32 %v466, %v533
    %v535 = vpop.f32.mrb[0].mxu0
    %536 = vdwg.mxu0
    %v537 = vtanh.pop %v534
    %s538 = scalar_lea.vmem [#allocation7], 512
    %v539 = vld [vmem:[%s538] sm:$0xff]
    %v540 = vld [vmem:[%s538 + $0x8] sm:$0xff]
    %v541 = vld [vmem:[%s538 + $0x10] sm:$0xff]
    %v542 = vld [vmem:[%s538 + $0x18] sm:$0xff]
    %v543 = vld [vmem:[%s538 + $0x20] sm:$0xff]
    %v544 = vld [vmem:[%s538 + $0x28] sm:$0xff]
    %v545 = vld [vmem:[%s538 + $0x30] sm:$0xff]
    %v546 = vld [vmem:[%s538 + $0x38] sm:$0xff]
    %v547 = vld [vmem:[%s538 + $0x40] sm:$0xff]
    %v548 = vld [vmem:[%s538 + $0x48] sm:$0xff]
    %v549 = vld [vmem:[%s538 + $0x50] sm:$0xff]
    %v550 = vld [vmem:[%s538 + $0x58] sm:$0xff]
    %v551 = vld [vmem:[%s538 + $0x60] sm:$0xff]
    %v552 = vld [vmem:[%s538 + $0x68] sm:$0xff]
    %v553 = vld [vmem:[%s538 + $0x70] sm:$0xff]
    %v554 = vld [vmem:[%s538 + $0x78] sm:$0xff]
    %s555 = scalar_lea.vmem [#allocation7], 640
    %v556 = vld [vmem:[%s555] sm:$0xff]
    %v557 = vld [vmem:[%s555 + $0x8] sm:$0xff]
    %v558 = vld [vmem:[%s555 + $0x10] sm:$0xff]
    %v559 = vld [vmem:[%s555 + $0x18] sm:$0xff]
    %v560 = vld [vmem:[%s555 + $0x20] sm:$0xff]
    %v561 = vld [vmem:[%s555 + $0x28] sm:$0xff]
    %v562 = vld [vmem:[%s555 + $0x30] sm:$0xff]
    %v563 = vld [vmem:[%s555 + $0x38] sm:$0xff]
    %v564 = vld [vmem:[%s555 + $0x40] sm:$0xff]
    %v565 = vld [vmem:[%s555 + $0x48] sm:$0xff]
    %v566 = vld [vmem:[%s555 + $0x50] sm:$0xff]
    %v567 = vld [vmem:[%s555 + $0x58] sm:$0xff]
    %v568 = vld [vmem:[%s555 + $0x60] sm:$0xff]
    %v569 = vld [vmem:[%s555 + $0x68] sm:$0xff]
    %v570 = vld [vmem:[%s555 + $0x70] sm:$0xff]
    %v571 = vld [vmem:[%s555 + $0x78] sm:$0xff]
    %572 = vmatprep.subr.mxu0 0.0
    %573 = vmatpush1.msra.mxu0 %v556
    %574 = vmatprep.subr.mxu0 0.0
    %575 = vmatpush1.msra.mxu0 %v557
    %576 = vmatprep.subr.mxu0 0.0
    %577 = vmatpush1.msra.mxu0 %v558
    %578 = vmatprep.subr.mxu0 0.0
    %579 = vmatpush1.msra.mxu0 %v559
    %580 = vmatprep.subr.mxu0 0.0
    %581 = vmatpush1.msra.mxu0 %v560
    %582 = vmatprep.subr.mxu0 0.0
    %583 = vmatpush1.msra.mxu0 %v561
    %584 = vmatprep.subr.mxu0 0.0
    %585 = vmatpush1.msra.mxu0 %v562
    %586 = vmatprep.subr.mxu0 0.0
    %587 = vmatpush1.msra.mxu0 %v563
    %588 = vmatprep.subr.mxu0 0.0
    %589 = vmatpush1.msra.mxu0 %v564
    %590 = vmatprep.subr.mxu0 0.0
    %591 = vmatpush1.msra.mxu0 %v565
    %592 = vmatprep.subr.mxu0 0.0
    %593 = vmatpush1.msra.mxu0 %v566
    %594 = vmatprep.subr.mxu0 0.0
    %595 = vmatpush1.msra.mxu0 %v567
    %596 = vmatprep.subr.mxu0 0.0
    %597 = vmatpush1.msra.mxu0 %v568
    %598 = vmatprep.subr.mxu0 0.0
    %599 = vmatpush1.msra.mxu0 %v569
    %600 = vmatprep.subr.mxu0 0.0
    %601 = vmatpush1.msra.mxu0 %v570
    %602 = vmatprep.subr.mxu0 0.0
    %603 = vmatpush1.msra.mxu0 %v571
    %604 = vmatprep.subr.mxu0 0.0
    %605 = vmatpush1.msra.mxu0 0.0
    %606 = vmatprep.subr.mxu0 0.0
    %607 = vmatpush1.msra.mxu0 0.0
    %608 = vmatprep.subr.mxu0 0.0
    %609 = vmatpush1.msra.mxu0 0.0
    %610 = vmatprep.subr.mxu0 0.0
    %611 = vmatpush1.msra.mxu0 0.0
    %612 = vmatprep.subr.mxu0 0.0
    %613 = vmatpush1.msra.mxu0 0.0
    %614 = vmatprep.subr.mxu0 0.0
    %615 = vmatpush1.msra.mxu0 0.0
    %616 = vmatprep.subr.mxu0 0.0
    %617 = vmatpush1.msra.mxu0 0.0
    %618 = vmatprep.subr.mxu0 0.0
    %619 = vmatpush1.msra.mxu0 0.0
    %620 = vmatprep.subr.mxu0 0.0
    %621 = vmatpush1.msra.mxu0 0.0
    %622 = vmatprep.subr.mxu0 0.0
    %623 = vmatpush1.msra.mxu0 0.0
    %624 = vmatprep.subr.mxu0 0.0
    %625 = vmatpush1.msra.mxu0 0.0
    %626 = vmatprep.subr.mxu0 0.0
    %627 = vmatpush1.msra.mxu0 0.0
    %628 = vmatprep.subr.mxu0 0.0
    %629 = vmatpush1.msra.mxu0 0.0
    %630 = vmatprep.subr.mxu0 0.0
    %631 = vmatpush1.msra.mxu0 0.0
    %632 = vmatprep.subr.mxu0 0.0
    %633 = vmatpush1.msra.mxu0 0.0
    %634 = vmatprep.subr.mxu0 0.0
    %635 = vmatpush1.msra.mxu0 0.0
    %636 = vmatprep.mubr.f32.mxu0 0.0
    %637 = vmatmul.mubr.f32.gmra.mrb[0].mxu0 %v537
    %v638 = vpop.f32.mrb[0].mxu0
    %v639 = vadd.f32 0.0, %v638
    %v640 = vpop.f32.mrb[0].mxu0
    %641 = vdwg.mxu0
    %642 = vmatprep.subr.mxu0 0.0
    %643 = vmatpush1.msra.mxu0 %v539
    %644 = vmatprep.subr.mxu0 0.0
    %645 = vmatpush1.msra.mxu0 %v540
    %646 = vmatprep.subr.mxu0 0.0
    %647 = vmatpush1.msra.mxu0 %v541
    %648 = vmatprep.subr.mxu0 0.0
    %649 = vmatpush1.msra.mxu0 %v542
    %650 = vmatprep.subr.mxu0 0.0
    %651 = vmatpush1.msra.mxu0 %v543
    %652 = vmatprep.subr.mxu0 0.0
    %653 = vmatpush1.msra.mxu0 %v544
    %654 = vmatprep.subr.mxu0 0.0
    %655 = vmatpush1.msra.mxu0 %v545
    %656 = vmatprep.subr.mxu0 0.0
    %657 = vmatpush1.msra.mxu0 %v546
    %658 = vmatprep.subr.mxu0 0.0
    %659 = vmatpush1.msra.mxu0 %v547
    %660 = vmatprep.subr.mxu0 0.0
    %661 = vmatpush1.msra.mxu0 %v548
    %662 = vmatprep.subr.mxu0 0.0
    %663 = vmatpush1.msra.mxu0 %v549
    %664 = vmatprep.subr.mxu0 0.0
    %665 = vmatpush1.msra.mxu0 %v550
    %666 = vmatprep.subr.mxu0 0.0
    %667 = vmatpush1.msra.mxu0 %v551
    %668 = vmatprep.subr.mxu0 0.0
    %669 = vmatpush1.msra.mxu0 %v552
    %670 = vmatprep.subr.mxu0 0.0
    %671 = vmatpush1.msra.mxu0 %v553
    %672 = vmatprep.subr.mxu0 0.0
    %673 = vmatpush1.msra.mxu0 %v554
    %674 = vmatprep.subr.mxu0 0.0
    %675 = vmatpush1.msra.mxu0 0.0
    %676 = vmatprep.subr.mxu0 0.0
    %677 = vmatpush1.msra.mxu0 0.0
    %678 = vmatprep.subr.mxu0 0.0
    %679 = vmatpush1.msra.mxu0 0.0
    %680 = vmatprep.subr.mxu0 0.0
    %681 = vmatpush1.msra.mxu0 0.0
    %682 = vmatprep.subr.mxu0 0.0
    %683 = vmatpush1.msra.mxu0 0.0
    %684 = vmatprep.subr.mxu0 0.0
    %685 = vmatpush1.msra.mxu0 0.0
    %686 = vmatprep.subr.mxu0 0.0
    %687 = vmatpush1.msra.mxu0 0.0
    %688 = vmatprep.subr.mxu0 0.0
    %689 = vmatpush1.msra.mxu0 0.0
    %690 = vmatprep.subr.mxu0 0.0
    %691 = vmatpush1.msra.mxu0 0.0
    %692 = vmatprep.subr.mxu0 0.0
    %693 = vmatpush1.msra.mxu0 0.0
    %694 = vmatprep.subr.mxu0 0.0
    %695 = vmatpush1.msra.mxu0 0.0
    %696 = vmatprep.subr.mxu0 0.0
    %697 = vmatpush1.msra.mxu0 0.0
    %698 = vmatprep.subr.mxu0 0.0
    %699 = vmatpush1.msra.mxu0 0.0
    %700 = vmatprep.subr.mxu0 0.0
    %701 = vmatpush1.msra.mxu0 0.0
    %702 = vmatprep.subr.mxu0 0.0
    %703 = vmatpush1.msra.mxu0 0.0
    %704 = vmatprep.subr.mxu0 0.0
    %705 = vmatpush1.msra.mxu0 0.0
    %706 = vmatprep.mubr.f32.mxu0 0.0
    %707 = vmatmul.mubr.f32.gmra.mrb[0].mxu0 %v351
    %v708 = vpop.f32.mrb[0].mxu0
    %v709 = vadd.f32 %v639, %v708
    %v710 = vpop.f32.mrb[0].mxu0
    %711 = vdwg.mxu0
    %v712 = vld [vmem:[%s3 + $0x5] sm:$0x1]
    %v713 = vlaneseq
    %v714 = vshrl.u32 %v713, 7
    %v715 = vsub.s32 0, %v714
    %v716 = vrot.slane %v712, %v715
    %v717 = vadd.f32 %v709, %v716
    %vm718 = vcmask 64512
    %719 = vst.msk [vmem:[#allocation8] sm:$0xff] %vm718, %v717
    // Predicated region
    $region30: #{_forward_padded.1} parent=1 // pred_check
      _
    $region31: #{_forward_padded.1} parent=1 // pred_check_branch
      %721 = sbr.rel (0) target = $region33
    $region32: #{_forward_padded.1} parent=1 // pred_region
      %s723 = ssub.s32 128, 128
      %724 = vsyncadd [#allocation4], %s723
      %s726 = sshll.u32 [#allocation8], 4
      %s727 = int_to_ptr.vmem [resolvable:$true] %s726
      %729 = dma.vmem_to_hbm [thread:$0]  %s727, 128, %s4, [#allocation4]
    $region33: #{_forward_padded.1} parent=1 // pred_fallthru
      _
    // Predicated region
    $region34: #{_forward_padded.1} parent=1 // pred_check
      _
    $region35: #{_forward_padded.1} parent=1 // pred_check_branch
      %731 = sbr.rel (0) target = $region37
    $region36: #{_forward_padded.1} parent=1 // pred_region
      %732 = dma.done [#allocation4], 128
    $region37: #{_forward_padded.1} parent=1 // pred_fallthru
      _
    %733 = vsyncpa [#allocation3], 1
    %734 = vsyncpa [#allocation6], 1
    %735 = vsyncpa [#allocation4], 1

</llo_original>
